<compile_context>
chip_gen: v6e
topology: v6e:2x2x1
jax: 0.10.0
libtpu: 0.0.40
codegen_flags: <defaults>
</compile_context>

<pallas_src>
from functools import partial

import jax
import jax.numpy as jnp
from jax.experimental import pallas as pl
from jax.experimental.pallas import tpu as pltpu


BN_EPS = 1e-5


# ----------------------------------------------------------------------------
# Pass 1: x = relu(state @ w1 + b1); per-tile partial BN statistics.
# ----------------------------------------------------------------------------
def _pass1_kernel(state_ref, w1_ref, b1_ref, x_ref, stats_ref, *,
                  true_b, tile_b, masked):
    # fc1 on the MXU: bf16 operands, f32 accumulation.
    x = jnp.dot(state_ref[...].astype(jnp.bfloat16), w1_ref[...],
                preferred_element_type=jnp.float32) + b1_ref[...]
    x = jnp.maximum(x, 0.0)
    x_ref[...] = x

    # Mask padded rows out of the batch statistics (only emitted when needed).
    if masked:
        row = (pl.program_id(0) * tile_b
               + jax.lax.broadcasted_iota(jnp.int32, (tile_b, 1), 0))
        x = jnp.where(row < true_b, x, 0.0)

    # One-pass stats: issue both sublane reductions back-to-back.
    s = jnp.sum(x, axis=0, keepdims=True)        # (1, H)
    ss = jnp.sum(x * x, axis=0, keepdims=True)   # (1, H)
    feat = s.shape[1]
    # Stats block is (8, H) so the store is a full (8,128) tile; rows 2..7 are zero.
    stats_ref[0] = jnp.concatenate(
        [s, ss, jnp.zeros((6, feat), jnp.float32)], axis=0)


# ----------------------------------------------------------------------------
# Pass 2: BN apply + fc2 + ReLU + fc3 (as a VPU reduction).
# ----------------------------------------------------------------------------
def _pass2_kernel(x_ref, a_ref, scale_ref, shift_ref, w2x_ref, w2a_ref,
                  b2_ref, w3_ref, b3_ref, out_ref):
    # BatchNorm apply with pre-fused scale/shift (f32 VPU math).
    xn = x_ref[...] * scale_ref[...] + shift_ref[...]

    # fc2 on cat([xn, action]) == xn @ w2x + action @ w2a + b2 (bf16 MXU, f32 acc).
    h = (jnp.dot(xn.astype(jnp.bfloat16), w2x_ref[...],
                 preferred_element_type=jnp.float32)
         + jnp.dot(a_ref[...].astype(jnp.bfloat16), w2a_ref[...],
                   preferred_element_type=jnp.float32)
         + b2_ref[...])
    h = jnp.maximum(h, 0.0)

    # fc3 (out_features == 1): VPU multiply + lane reduction instead of an MXU
    # matmul with N=1.  b3 is a scalar read from SMEM.
    q = jnp.sum(h * w3_ref[...], axis=-1) + b3_ref[0]          # (tile_b,)
    out_ref[...] = q.reshape(1, -1).astype(out_ref.dtype)      # lane-dense store


# ----------------------------------------------------------------------------
# Wrapper
# ----------------------------------------------------------------------------
def critic_forward(state, action, params, *, tile_b=128):
    """state: (B, state_dim) f32, action: (B, action_dim) f32 -> (B, 1) f32."""
    assert tile_b % 128 == 0, "tile_b must be a multiple of 128"
    B, S = state.shape
    A = action.shape[1]
    H = params["w1"].shape[1]
    F2 = params["w2x"].shape[1]

    pad_b = pl.cdiv(B, tile_b) * tile_b
    num_tiles = pad_b // tile_b
    if pad_b != B:
        state = jnp.pad(state, ((0, pad_b - B), (0, 0)))
        action = jnp.pad(action, ((0, pad_b - B), (0, 0)))

    # Cast weights that feed the MXU to bf16 once (also halves their DMA).
    w1 = params["w1"].astype(jnp.bfloat16)
    w2x = params["w2x"].astype(jnp.bfloat16)
    w2a = params["w2a"].astype(jnp.bfloat16)
    w3_row = jnp.reshape(params["w3"], (1, F2))        # f32, used on the VPU
    b3 = jnp.reshape(params["b3"], (1,))               # SMEM scalar

    const2 = lambda i: (0, 0)
    parallel = pltpu.CompilerParams(dimension_semantics=("parallel",))

    # ---------------- pass 1: fc1 + ReLU + partial BN stats ----------------
    x, stats = pl.pallas_call(
        partial(_pass1_kernel, true_b=B, tile_b=tile_b, masked=(pad_b != B)),
        grid=(num_tiles,),
        in_specs=[
            pl.BlockSpec((tile_b, S), lambda i: (i, 0)),   # state tile
            pl.BlockSpec((S, H), const2),                  # w1 (resident)
            pl.BlockSpec((1, H), const2),                  # b1 (resident)
        ],
        out_specs=(
            pl.BlockSpec((tile_b, H), lambda i: (i, 0)),   # x tile
            pl.BlockSpec((1, 8, H), lambda i: (i, 0, 0)),  # per-tile stats
        ),
        out_shape=(
            jax.ShapeDtypeStruct((pad_b, H), jnp.float32),
            jax.ShapeDtypeStruct((num_tiles, 8, H), jnp.float32),
        ),
        compiler_params=parallel,
    )(state, w1, params["b1"])

    # ------- reduce partial stats -> fused BN scale / shift (tiny XLA) -------
    s_tot = jnp.sum(stats[:, 0, :], axis=0)                # (H,)
    ss_tot = jnp.sum(stats[:, 1, :], axis=0)               # (H,)
    mean = s_tot / B
    var = jnp.maximum(ss_tot / B - mean * mean, 0.0)       # biased batch variance
    inv_std = jax.lax.rsqrt(var + BN_EPS)
    gamma = params["gamma"][0]
    beta = params["beta"][0]
    scale = (gamma * inv_std)[None, :]                     # (1, H)
    shift = (beta - mean * gamma * inv_std)[None, :]       # (1, H)

    # ---------------- pass 2: BN apply + fc2 + ReLU + fc3 ----------------
    q_row = pl.pallas_call(
        _pass2_kernel,
        grid=(num_tiles,),
        in_specs=[
            pl.BlockSpec((tile_b, H), lambda i: (i, 0)),   # x tile
            pl.BlockSpec((tile_b, A), lambda i: (i, 0)),   # action tile
            pl.BlockSpec((1, H), const2),                  # BN scale
            pl.BlockSpec((1, H), const2),                  # BN shift
            pl.BlockSpec((H, F2), const2),                 # w2x (resident)
            pl.BlockSpec((A, F2), const2),                 # w2a (resident)
            pl.BlockSpec((1, F2), const2),                 # b2
            pl.BlockSpec((1, F2), const2),                 # w3 row (VPU)
            pl.BlockSpec(memory_space=pltpu.MemorySpace.SMEM),  # b3 scalar
        ],
        out_specs=pl.BlockSpec((1, tile_b), lambda i: (0, i)),  # lane-dense q
        out_shape=jax.ShapeDtypeStruct((1, pad_b), jnp.float32),
        compiler_params=parallel,
    )(x, action, scale, shift, w2x, w2a, params["b2"], w3_row, b3)

    return q_row[0, :B].reshape(B, 1)


# ----------------------------------------------------------------------------
# Parameter init mirroring Critic.__init__ / reset_parameters.
# ----------------------------------------------------------------------------
def init_params(key, state_dim, action_dim, fc1_units=128, fc2_units=128):
    ks = jax.random.split(key, 8)

    # hidden_init uses weight.size()[0] == out_features (quirk of the original code)
    lim1 = 1.0 / jnp.sqrt(float(fc1_units))
    lim2 = 1.0 / jnp.sqrt(float(fc2_units))

    # weights stored transposed: (in_features, out_features)
    w1 = jax.random.uniform(ks[0], (state_dim, fc1_units), jnp.float32, -lim1, lim1)
    w2 = jax.random.uniform(ks[1], (fc1_units + action_dim, fc2_units),
                            jnp.float32, -lim2, lim2)
    w3 = jax.random.uniform(ks[2], (fc2_units, 1), jnp.float32, -0.003, 0.003)

    # biases keep PyTorch Linear default init: U(-1/sqrt(fan_in), 1/sqrt(fan_in))
    bl1 = 1.0 / jnp.sqrt(float(state_dim))
    bl2 = 1.0 / jnp.sqrt(float(fc1_units + action_dim))
    bl3 = 1.0 / jnp.sqrt(float(fc2_units))
    b1 = jax.random.uniform(ks[3], (1, fc1_units), jnp.float32, -bl1, bl1)
    b2 = jax.random.uniform(ks[4], (1, fc2_units), jnp.float32, -bl2, bl2)
    b3 = jax.random.uniform(ks[5], (1, 1), jnp.float32, -bl3, bl3)

    # BatchNorm1d affine params at init: gamma=1, beta=0
    gamma = jnp.ones((1, fc1_units), jnp.float32)
    beta = jnp.zeros((1, fc1_units), jnp.float32)

    return {
        "w1": w1, "b1": b1,
        "gamma": gamma, "beta": beta,
        # split fc2 weight into the bn-output block and the action block
        "w2x": w2[:fc1_units, :], "w2a": w2[fc1_units:, :], "b2": b2,
        "w3": w3, "b3": b3,
    }


def critic_ref(state, action, params):
    """Pure-JAX reference mirroring the kernel's bf16-at-the-MXU numerics."""
    bf = jnp.bfloat16
    x = jnp.dot(state.astype(bf), params["w1"].astype(bf),
                preferred_element_type=jnp.float32) + params["b1"]
    x = jnp.maximum(x, 0.0)
    mean = jnp.mean(x, axis=0, keepdims=True)
    var = jnp.mean((x - mean) ** 2, axis=0, keepdims=True)
    xn = (x - mean) * jax.lax.rsqrt(var + BN_EPS) * params["gamma"] + params["beta"]
    h = (jnp.dot(xn.astype(bf), params["w2x"].astype(bf),
                 preferred_element_type=jnp.float32)
         + jnp.dot(action.astype(bf), params["w2a"].astype(bf),
                   preferred_element_type=jnp.float32)
         + params["b2"])
    h = jnp.maximum(h, 0.0)
    return jnp.sum(h * params["w3"].reshape(1, -1), axis=-1, keepdims=True) + params["b3"]


if __name__ == "__main__":
    key = jax.random.PRNGKey(0)
    k_state, k_action, k_params = jax.random.split(key, 3)

    # Small but non-trivial: 200 rows -> padded to 256 -> a 2-step batch grid,
    # exercising tiling, masking of padded rows, and the cross-tile BN stats.
    batch, state_dim, action_dim = 200, 16, 4
    state = jax.random.normal(k_state, (batch, state_dim), jnp.float32)
    action = jax.random.uniform(k_action, (batch, action_dim), jnp.float32,
                                minval=-1.0, maxval=1.0)

    params = init_params(k_params, state_dim, action_dim)

    q = critic_forward(state, action, params, tile_b=128)
    q = jax.block_until_ready(q)

    q_ref = critic_ref(state, action, params)
    assert q.shape == (batch, 1)
    assert jnp.allclose(q, q_ref, atol=1e-2, rtol=1e-2), (q, q_ref)

    print("KERNEL_OK")
</pallas_src>

<mosaic_0001>
module attributes {stable_mosaic.version = 11 : i64} {
  func.func @_pass1_kernel(%arg0: i32, %arg1: memref<128x16xf32, #tpu.memory_space<vmem>>, %arg2: memref<16x128xbf16, #tpu.memory_space<vmem>>, %arg3: memref<1x128xf32, #tpu.memory_space<vmem>>, %arg4: memref<128x128xf32, #tpu.memory_space<vmem>>, %arg5: memref<1x8x128xf32, #tpu.memory_space<vmem>>) attributes {dimension_semantics = [#tpu.dimension_semantics<parallel>], iteration_bounds = array<i64: 2>, scalar_prefetch = 0 : i64, scratch_operands = 0 : i64, tpu.core_type = #tpu.core_type<tc>, window_params = [{transform_indices = @transform_0, window_bounds = array<i64: 128, 16>}, {pipeline_mode = #tpu.pipeline_mode<synchronous>, transform_indices = @transform_1, window_bounds = array<i64: 16, 128>}, {pipeline_mode = #tpu.pipeline_mode<synchronous>, transform_indices = @transform_2, window_bounds = array<i64: 1, 128>}, {transform_indices = @transform_3, window_bounds = array<i64: 128, 128>}, {transform_indices = @transform_4, window_bounds = array<i64: 1, 8, 128>}]} {
    %c0 = arith.constant 0 : index
    %c0_0 = arith.constant 0 : index
    %0 = vector.load %arg1[%c0, %c0_0] : memref<128x16xf32, #tpu.memory_space<vmem>>, vector<128x16xf32>
    %1 = arith.truncf %0 : vector<128x16xf32> to vector<128x16xbf16>
    %c0_1 = arith.constant 0 : index
    %c0_2 = arith.constant 0 : index
    %2 = vector.load %arg2[%c0_1, %c0_2] : memref<16x128xbf16, #tpu.memory_space<vmem>>, vector<16x128xbf16>
    %cst = arith.constant dense<0.000000e+00> : vector<128x128xf32>
    %3 = tpu.matmul %1, %2, %cst {dimension_numbers = #tpu.dot_dimension_numbers<[1], [0], [0], [1], [0, 0, 1, 1], [], []>} : vector<128x16xbf16>, vector<16x128xbf16>, vector<128x128xf32> -> vector<128x128xf32>
    %c0_3 = arith.constant 0 : index
    %c0_4 = arith.constant 0 : index
    %4 = vector.load %arg3[%c0_3, %c0_4] : memref<1x128xf32, #tpu.memory_space<vmem>>, vector<1x128xf32>
    %5 = vector.broadcast %4 : vector<1x128xf32> to vector<128x128xf32>
    %6 = arith.addf %3, %5 : vector<128x128xf32>
    %cst_5 = arith.constant 0.000000e+00 : f32
    %7 = vector.broadcast %cst_5 : f32 to vector<128x128xf32>
    %8 = arith.maximumf %6, %7 : vector<128x128xf32>
    %c0_6 = arith.constant 0 : index
    %c0_7 = arith.constant 0 : index
    %9 = vector.load %arg4[%c0_6, %c0_7] : memref<128x128xf32, #tpu.memory_space<vmem>>, vector<128x128xf32>
    tpu.vector_store %arg4[%c0_6, %c0_7], %8 {strides = array<i32>} : memref<128x128xf32, #tpu.memory_space<vmem>>, vector<128x128xf32>,
    %c128_i32 = arith.constant 128 : i32
    %10 = arith.muli %arg0, %c128_i32 : i32
    %11 = tpu.iota {dimensions = array<i32: 0>} : vector<128x1xi32>
    %12 = vector.broadcast %10 : i32 to vector<128x1xi32>
    %13 = arith.addi %12, %11 : vector<128x1xi32>
    %c200_i32 = arith.constant 200 : i32
    %14 = vector.broadcast %c200_i32 : i32 to vector<128x1xi32>
    %15 = arith.cmpi slt, %13, %14 : vector<128x1xi32>
    %cst_8 = arith.constant 0.000000e+00 : f32
    %16 = vector.shape_cast %15 : vector<128x1xi1> to vector<128x1xi1>
    %17 = vector.broadcast %16 : vector<128x1xi1> to vector<128x128xi1>
    %18 = vector.broadcast %cst_8 : f32 to vector<128x128xf32>
    %19 = arith.select %17, %8, %18 : vector<128x128xi1>, vector<128x128xf32>
    %cst_9 = arith.constant dense<0.000000e+00> : vector<128xf32>
    %20 = vector.multi_reduction <add>, %19, %cst_9 [0] : vector<128x128xf32> to vector<128xf32>
    %21 = vector.shape_cast %20 : vector<128xf32> to vector<1x128xf32>
    %22 = arith.mulf %19, %19 : vector<128x128xf32>
    %cst_10 = arith.constant dense<0.000000e+00> : vector<128xf32>
    %23 = vector.multi_reduction <add>, %22, %cst_10 [0] : vector<128x128xf32> to vector<128xf32>
    %24 = vector.shape_cast %23 : vector<128xf32> to vector<1x128xf32>
    %cst_11 = arith.constant 0.000000e+00 : f32
    %25 = vector.broadcast %cst_11 : f32 to vector<6x128xf32>
    %26 = tpu.concatenate %21, %24, %25 in 0 : vector<1x128xf32>, vector<1x128xf32>, vector<6x128xf32> -> vector<8x128xf32>
    %c0_12 = arith.constant 0 : index
    %c0_13 = arith.constant 0 : index
    %c0_14 = arith.constant 0 : index
    %27 = vector.load %arg5[%c0_12, %c0_13, %c0_14] : memref<1x8x128xf32, #tpu.memory_space<vmem>>, vector<1x8x128xf32>
    %28 = vector.shape_cast %27 : vector<1x8x128xf32> to vector<8x128xf32>
    %29 = vector.shape_cast %26 : vector<8x128xf32> to vector<1x8x128xf32>
    tpu.vector_store %arg5[%c0_12, %c0_13, %c0_14], %29 {strides = array<i32>} : memref<1x8x128xf32, #tpu.memory_space<vmem>>, vector<1x8x128xf32>,
    return
  }
  func.func @transform_0(%arg0: i32) -> (i32, i32) {
    %c0_i32 = arith.constant 0 : i32
    %c0_i32_0 = arith.constant 0 : i32
    return %arg0, %c0_i32 : i32, i32
  }
  func.func @transform_1(%arg0: i32) -> (i32, i32) {
    %c0_i32 = arith.constant 0 : i32
    %c0_i32_0 = arith.constant 0 : i32
    %c0_i32_1 = arith.constant 0 : i32
    return %c0_i32, %c0_i32_0 : i32, i32
  }
  func.func @transform_2(%arg0: i32) -> (i32, i32) {
    %c0_i32 = arith.constant 0 : i32
    %c0_i32_0 = arith.constant 0 : i32
    %c0_i32_1 = arith.constant 0 : i32
    return %c0_i32, %c0_i32_0 : i32, i32
  }
  func.func @transform_3(%arg0: i32) -> (i32, i32) {
    %c0_i32 = arith.constant 0 : i32
    %c0_i32_0 = arith.constant 0 : i32
    return %arg0, %c0_i32 : i32, i32
  }
  func.func @transform_4(%arg0: i32) -> (i32, i32, i32) {
    %c0_i32 = arith.constant 0 : i32
    %c0_i32_0 = arith.constant 0 : i32
    %c0_i32_1 = arith.constant 0 : i32
    return %arg0, %c0_i32, %c0_i32_0 : i32, i32, i32
  }
}

</mosaic_0001>

<llo_original>
// kernel: tpu_custom_call.1
$region0: #{tpu_custom_call.1}
  #allocation0 [shape = 'u32[]', space=smem, size = 0x4, offset = 0x4, fixed_abs, tag = 'smem constant byte address 0x4 - core index']
  #allocation1 [shape = 'u32[144,128]{1,0:T(1,128)}', space=vmem, size = 0x12000, scoped, tag = 'internal scratch']
  %s0 = inlined_call_operand.vmem [shape: f32[256,16], index: 0, kind: input, shape index: {}]
  %s1 = inlined_call_operand.vmem [shape: bf16[16,128], index: 1, kind: input, shape index: {}]
  %s2 = inlined_call_operand.vmem [shape: f32[1,128], index: 2, kind: input, shape index: {}]
  %s3 = inlined_call_operand.hbm [shape: f32[256,128], index: 3, kind: output, shape index: {0}]
  %s4 = inlined_call_operand.hbm [shape: f32[2,8,128], index: 4, kind: output, shape index: {1}]
  %5 = xla_tuple %s3, %s4
  %s6 = sld [smem:[#allocation0]]
  $region53: #{tpu_custom_call.1} parent=0
    _
  %s8 = ssub.s32 1, %s6
  %s9 = scalar_select 0, %s8, %s6
  $region1: #{tpu_custom_call.1} parent=0
    #allocation2 [shape = 'u8[131072]{0}', space=vmem, size = 0x20000, scoped, tag = 'output window, operand 0']
    #allocation3 [shape = 's32[2]{0}', space=sflag, size = 0x8, scoped, tag = 'scoped memory for tpu_custom_call.1']
    #allocation4 [shape = 'u8[8192]{0}', space=vmem, size = 0x2000, scoped, tag = 'output window, operand 1']
    #allocation5 [shape = 's32[2]{0}', space=sflag, size = 0x8, scoped, tag = 'scoped memory for tpu_custom_call.1']
    %10 = vsyncpa [#allocation3], 0
    %s11 = scalar_lea.sflag [#allocation3], 1
    %12 = vsyncpa %s11, 0
    %13 = vsyncpa [#allocation5], 0
    %s14 = scalar_lea.sflag [#allocation5], 1
    %15 = vsyncpa %s14, 0
    loop: start=0, step=1, limit=4
    $region2: #{tpu_custom_call.1} parent=1 // loop_pre_header
      _
    $region3: #{tpu_custom_call.1} parent=1 // loop_header
      %s17 = sphi 0, %s21
      %p18 = scmp.ge.s32.totalorder %s17, 4
      %s27 = sphi 0, %s29
      %s30 = sphi 0, %s27
      %s31 = sphi 0, %s30
      %s47 = sphi 0, %s31
      %s51 = sphi 0, %s51
      %s53 = sphi 0, %s51
      %s54 = sphi 0, %s53
      %s68 = sphi 0, %s54
      %s72 = sphi 0, %s72
      %s74 = sphi 0, %s72
      %s75 = sphi 0, %s74
      %s89 = sphi 0, %s75
      %s95 = sphi 0, %s97
      %s98 = sphi 0, %s95
      %s99 = sphi 0, %s98
      %s115 = sphi 0, %s99
      %s121 = sphi 0, %s123
      %s124 = sphi 0, %s121
      %s125 = sphi 0, %s124
      %s141 = sphi 0, %s125
    $region4: #{tpu_custom_call.1} parent=1 // loop_header_branch
      %20 = sbr.rel (%p18) target = $region8
    $region5: #{tpu_custom_call.1} parent=1 // loop_body
      %s22 = ssub.s32 %s17, 1
      %s23 = ssub.s32 %s17, 2
      %s24 = sadd.s32 %s17, 1
      %s25 = ssub.s32 %s17, %s24
      %p26 = scmp.eq.s32.totalorder %s25, 0
      %s28 = sadd.s32 %s27, 1
      %s29 = scalar_select %p26, %s27, %s28
      %p32 = pneg %p26
      %p33 = scmp.eq.s32.totalorder %s17, 1
      %p34 = por %p32, %p33
      %p35 = scmp.ne.s32.totalorder %s27, %s30
      %p36 = scmp.eq.s32.totalorder %s17, 0
      %p37 = por %p35, %p36
      %p38 = scmp.ne.s32.totalorder %s27, %s30
      %p39 = scmp.eq.s32.totalorder %s22, 1
      %p40 = por %p38, %p39
      %p41 = scmp.ne.s32.totalorder %s30, %s31
      %p42 = scmp.eq.s32.totalorder %s22, 0
      %p43 = por %p41, %p42
      %p44 = scmp.ne.s32.totalorder %s30, %s31
      %p45 = scmp.eq.s32.totalorder %s23, 1
      %p46 = por %p44, %p45
      %p48 = scmp.ne.s32.totalorder %s31, %s47
      %p49 = scmp.eq.s32.totalorder %s23, 0
      %p50 = por %p48, %p49
      %s52 = sadd.s32 %s51, 1
      %p55 = scmp.eq.s32.totalorder %s17, 1
      %p56 = scmp.ne.s32.totalorder %s51, %s53
      %p57 = scmp.eq.s32.totalorder %s17, 0
      %p58 = por %p56, %p57
      %p59 = scmp.ne.s32.totalorder %s51, %s53
      %p60 = scmp.eq.s32.totalorder %s22, 1
      %p61 = por %p59, %p60
      %p62 = scmp.ne.s32.totalorder %s53, %s54
      %p63 = scmp.eq.s32.totalorder %s22, 0
      %p64 = por %p62, %p63
      %p65 = scmp.ne.s32.totalorder %s53, %s54
      %p66 = scmp.eq.s32.totalorder %s23, 1
      %p67 = por %p65, %p66
      %p69 = scmp.ne.s32.totalorder %s54, %s68
      %p70 = scmp.eq.s32.totalorder %s23, 0
      %p71 = por %p69, %p70
      %s73 = sadd.s32 %s72, 1
      %p76 = scmp.eq.s32.totalorder %s17, 1
      %p77 = scmp.ne.s32.totalorder %s72, %s74
      %p78 = scmp.eq.s32.totalorder %s17, 0
      %p79 = por %p77, %p78
      %p80 = scmp.ne.s32.totalorder %s72, %s74
      %p81 = scmp.eq.s32.totalorder %s22, 1
      %p82 = por %p80, %p81
      %p83 = scmp.ne.s32.totalorder %s74, %s75
      %p84 = scmp.eq.s32.totalorder %s22, 0
      %p85 = por %p83, %p84
      %p86 = scmp.ne.s32.totalorder %s74, %s75
      %p87 = scmp.eq.s32.totalorder %s23, 1
      %p88 = por %p86, %p87
      %p90 = scmp.ne.s32.totalorder %s75, %s89
      %p91 = scmp.eq.s32.totalorder %s23, 0
      %p92 = por %p90, %p91
      %s93 = ssub.s32 %s17, %s24
      %p94 = scmp.eq.s32.totalorder %s93, 0
      %s96 = sadd.s32 %s95, 1
      %s97 = scalar_select %p94, %s95, %s96
      %p100 = pneg %p94
      %p101 = scmp.eq.s32.totalorder %s17, 1
      %p102 = por %p100, %p101
      %p103 = scmp.ne.s32.totalorder %s95, %s98
      %p104 = scmp.eq.s32.totalorder %s17, 0
      %p105 = por %p103, %p104
      %p106 = scmp.ne.s32.totalorder %s95, %s98
      %p107 = scmp.eq.s32.totalorder %s22, 1
      %p108 = por %p106, %p107
      %p109 = scmp.ne.s32.totalorder %s98, %s99
      %p110 = scmp.eq.s32.totalorder %s22, 0
      %p111 = por %p109, %p110
      %p112 = scmp.ne.s32.totalorder %s98, %s99
      %p113 = scmp.eq.s32.totalorder %s23, 1
      %p114 = por %p112, %p113
      %p116 = scmp.ne.s32.totalorder %s99, %s115
      %p117 = scmp.eq.s32.totalorder %s23, 0
      %p118 = por %p116, %p117
      %s119 = ssub.s32 %s17, %s24
      %p120 = scmp.eq.s32.totalorder %s119, 0
      %s122 = sadd.s32 %s121, 1
      %s123 = scalar_select %p120, %s121, %s122
      %p126 = pneg %p120
      %p127 = scmp.eq.s32.totalorder %s17, 1
      %p128 = por %p126, %p127
      %p129 = scmp.ne.s32.totalorder %s121, %s124
      %p130 = scmp.eq.s32.totalorder %s17, 0
      %p131 = por %p129, %p130
      %p132 = scmp.ne.s32.totalorder %s121, %s124
      %p133 = scmp.eq.s32.totalorder %s22, 1
      %p134 = por %p132, %p133
      %p135 = scmp.ne.s32.totalorder %s124, %s125
      %p136 = scmp.eq.s32.totalorder %s22, 0
      %p137 = por %p135, %p136
      %p138 = scmp.ne.s32.totalorder %s124, %s125
      %p139 = scmp.eq.s32.totalorder %s23, 1
      %p140 = por %p138, %p139
      %p142 = scmp.ne.s32.totalorder %s125, %s141
      %p143 = scmp.eq.s32.totalorder %s23, 0
      %p144 = por %p142, %p143
      %p145 = scmp.le.s32.totalorder 1, %s17
      %p146 = scmp.lt.s32.totalorder %s17, 3
      %p147 = pnand %p145, %p146
      %p148 = pneg %p147
      // Predicated region
      $region9: #{tpu_custom_call.1} parent=5 // pred_check
        _
      $region10: #{tpu_custom_call.1} parent=5 // pred_check_branch
        %150 = sbr.rel (%p147) target = $region12
      $region11: #{tpu_custom_call.1} parent=5 // pred_region
        %s151 = ssub.s32 %s17, 1
        // Predicated region
        $region13: #{tpu_custom_call.1} parent=11 // pred_check
          %p152 = pneg %p64
        $region14: #{tpu_custom_call.1} parent=11 // pred_check_branch
          %154 = sbr.rel (%p152) target = $region16
        $region15: #{tpu_custom_call.1} parent=11 // pred_region
          _
        $region16: #{tpu_custom_call.1} parent=11 // pred_fallthru
          _
        // Predicated region
        $region17: #{tpu_custom_call.1} parent=11 // pred_check
          %p155 = pneg %p85
        $region18: #{tpu_custom_call.1} parent=11 // pred_check_branch
          %157 = sbr.rel (%p155) target = $region20
        $region19: #{tpu_custom_call.1} parent=11 // pred_region
          _
        $region20: #{tpu_custom_call.1} parent=11 // pred_fallthru
          _
      $region12: #{tpu_custom_call.1} parent=5 // pred_fallthru
        _
      %p158 = scmp.lt.s32.totalorder %s17, 2
      // Predicated region
      $region21: #{tpu_custom_call.1} parent=5 // pred_check
        %p159 = pneg %p158
      $region22: #{tpu_custom_call.1} parent=5 // pred_check_branch
        %161 = sbr.rel (%p159) target = $region24
      $region23: #{tpu_custom_call.1} parent=5 // pred_region
        // Predicated region
        $region25: #{tpu_custom_call.1} parent=23 // pred_check
          %p162 = pneg %p37
        $region26: #{tpu_custom_call.1} parent=23 // pred_check_branch
          %164 = sbr.rel (%p162) target = $region28
        $region27: #{tpu_custom_call.1} parent=23 // pred_region
          %s165 = smul.u32 16, %s17
          %p166 = scmp.lt.s32.totalorder %s165, 31
          %s167 = scalar_select %p166, %s165, 31
          %s168 = smul.addr %s167, 8
          %s169 = scalar_lea.vmem %s0, %s168
          %s170 = smul.u32 16, %s17
        $region28: #{tpu_custom_call.1} parent=23 // pred_fallthru
          _
      $region24: #{tpu_custom_call.1} parent=5 // pred_fallthru
        _
      %p171 = scmp.le.s32.totalorder 1, %s17
      %p172 = scmp.lt.s32.totalorder %s17, 3
      %p173 = pnand %p171, %p172
      %p174 = pneg %p173
      // Predicated region
      $region29: #{tpu_custom_call.1} parent=5 // pred_check
        _
      $region30: #{tpu_custom_call.1} parent=5 // pred_check_branch
        %176 = sbr.rel (%p173) target = $region32
      $region31: #{tpu_custom_call.1} parent=5 // pred_region
        %s177 = ssub.s32 %s17, 1
        %s178 = smul.u32 16, %s22
        %p179 = scmp.lt.s32.totalorder %s178, 31
        %s180 = scalar_select %p179, %s178, 31
        %s181 = smul.addr %s180, 8
        %s182 = scalar_lea.vmem %s0, %s181
        %p183 = pneg %p43
        %p184 = pneg %p40
        %p185 = pneg %p64
        %p186 = pneg %p61
        %p187 = pneg %p85
        %p188 = pneg %p82
        %p189 = pneg %p111
        %p190 = pneg %p108
        %s191 = sand.u32 %s98, 1
        %s192 = scalar_lea.sflag [#allocation3], %s191
        %s193 = sand.u32 %s98, 1
        %s194 = smul.addr %s193, 128
        %s195 = scalar_lea.vmem [#allocation2], %s194
        %p196 = pneg %p137
        %p197 = pneg %p134
        %s198 = sand.u32 %s124, 1
        %s199 = scalar_lea.sflag [#allocation5], %s198
        %s200 = sand.u32 %s124, 1
        %s201 = smul.addr %s200, 8
        %s202 = scalar_lea.vmem [#allocation4], %s201
        %s203 = smul.u32 16, %s22
        %p204 = scmp.lt.s32.totalorder %s203, 31
        %s205 = scalar_select %p204, %s203, 31
        %s206 = smul.addr %s205, 8
        %s207 = scalar_lea.vmem %s0, %s206
        %s208 = smul.u32 16, %s22
        %s209 = smul.u32 16, %s22
        %v211 = vld [vmem:[%s207] sm:$0xff]
        %v212 = vld [vmem:[%s207 + $0x8] sm:$0xff]
        %v213 = vld [vmem:[%s207 + $0x10] sm:$0xff]
        %v214 = vld [vmem:[%s207 + $0x18] sm:$0xff]
        %v215 = vld [vmem:[%s207 + $0x20] sm:$0xff]
        %v216 = vld [vmem:[%s207 + $0x28] sm:$0xff]
        %v217 = vld [vmem:[%s207 + $0x30] sm:$0xff]
        %v218 = vld [vmem:[%s207 + $0x38] sm:$0xff]
        %v219 = vld [vmem:[%s207 + $0x40] sm:$0xff]
        %v220 = vld [vmem:[%s207 + $0x48] sm:$0xff]
        %v221 = vld [vmem:[%s207 + $0x50] sm:$0xff]
        %v222 = vld [vmem:[%s207 + $0x58] sm:$0xff]
        %v223 = vld [vmem:[%s207 + $0x60] sm:$0xff]
        %v224 = vld [vmem:[%s207 + $0x68] sm:$0xff]
        %v225 = vld [vmem:[%s207 + $0x70] sm:$0xff]
        %v226 = vld [vmem:[%s207 + $0x78] sm:$0xff]
        %v227 = vpack.c.bf16 %v212, %v211
        %v228 = vpack.c.bf16 %v214, %v213
        %v229 = vpack.c.bf16 %v216, %v215
        %v230 = vpack.c.bf16 %v218, %v217
        %v231 = vpack.c.bf16 %v220, %v219
        %v232 = vpack.c.bf16 %v222, %v221
        %v233 = vpack.c.bf16 %v224, %v223
        %v234 = vpack.c.bf16 %v226, %v225
        %v235 = vld [vmem:[%s1] sm:$0xf]
        %v236 = vld [vmem:[%s1 + $0x4] sm:$0xf]
        %v237 = vld [vmem:[%s2] sm:$0x1]
        %v239 = vlaneseq
        %v240 = vshrl.u32 %v239, 7
        %v241 = vsub.s32 0, %v240
        %v242 = vrot.slane %v237, %v241
        %v246 = vunpack.c.l.b16 %v235
        %v247 = vunpack.c.l.b16 %v236
        %v248 = vpack.c.b16 %v247, %v246
        %vm250 = vcmask 130048
        %v252 = vsel %vm250, %v227, 0
        %v255 = vsel %vm250, %v228, 0
        %v258 = vsel %vm250, %v229, 0
        %v261 = vsel %vm250, %v230, 0
        %v264 = vsel %vm250, %v231, 0
        %v267 = vsel %vm250, %v232, 0
        %v270 = vsel %vm250, %v233, 0
        %v273 = vsel %vm250, %v234, 0
        %275 = vmatprep.subr.bf16.mxu0 0
        %276 = vmatpush1.bf16.msra.mxu0 0
        %277 = vmatprep.subr.bf16.mxu0 0
        %278 = vmatpush1.bf16.msra.mxu0 0
        %279 = vmatprep.subr.bf16.mxu0 0
        %280 = vmatpush1.bf16.msra.mxu0 0
        %281 = vmatprep.subr.bf16.mxu0 0
        %282 = vmatpush1.bf16.msra.mxu0 0
        %283 = vmatprep.subr.bf16.mxu0 0
        %284 = vmatpush1.bf16.msra.mxu0 0
        %285 = vmatprep.subr.bf16.mxu0 0
        %286 = vmatpush1.bf16.msra.mxu0 0
        %287 = vmatprep.subr.bf16.mxu0 0
        %288 = vmatpush1.bf16.msra.mxu0 0
        %289 = vmatprep.subr.bf16.mxu0 0
        %290 = vmatpush1.bf16.msra.mxu0 %v248
        %291 = vmatprep.subr.bf16.mxu0 0
        %292 = vmatpush2.bf16.msra.mxu0 0
        %293 = vmatprep.subr.bf16.mxu0 0
        %294 = vmatpush2.bf16.msra.mxu0 0
        %295 = vmatprep.subr.bf16.mxu0 0
        %296 = vmatpush2.bf16.msra.mxu0 0
        %297 = vmatprep.subr.bf16.mxu0 0
        %298 = vmatpush2.bf16.msra.mxu0 0
        %299 = vmatprep.subr.bf16.mxu0 0
        %300 = vmatpush2.bf16.msra.mxu0 0
        %301 = vmatprep.subr.bf16.mxu0 0
        %302 = vmatpush2.bf16.msra.mxu0 0
        %303 = vmatprep.subr.bf16.mxu0 0
        %304 = vmatpush2.bf16.msra.mxu0 0
        %305 = vmatprep.subr.bf16.mxu0 0
        %306 = vmatpush2.bf16.msra.mxu0 0
        %307 = vmatprep.mubr.bf16.mxu0 0
        %308 = vmatmul.mubr.bf16.gmra.mxu0 %v252
        %v309 = vpop.f32.mrf.mxu0
        %v310 = vadd.f32 %v242, %v309
        %v311 = vpop.f32.mrf.mxu0
        %v312 = vpop.f32.mrf.mxu0
        %v313 = vadd.f32 %v242, %v312
        %v314 = vpop.f32.mrf.mxu0
        %315 = vmatprep.mubr.bf16.mxu0 0
        %316 = vmatmul.mubr.bf16.gmra.mxu0 %v255
        %v317 = vpop.f32.mrf.mxu0
        %v318 = vadd.f32 %v242, %v317
        %v319 = vpop.f32.mrf.mxu0
        %v320 = vpop.f32.mrf.mxu0
        %v321 = vadd.f32 %v242, %v320
        %v322 = vpop.f32.mrf.mxu0
        %323 = vmatprep.mubr.bf16.mxu0 0
        %324 = vmatmul.mubr.bf16.gmra.mxu0 %v258
        %v325 = vpop.f32.mrf.mxu0
        %v326 = vadd.f32 %v242, %v325
        %v327 = vpop.f32.mrf.mxu0
        %v328 = vpop.f32.mrf.mxu0
        %v329 = vadd.f32 %v242, %v328
        %v330 = vpop.f32.mrf.mxu0
        %331 = vmatprep.mubr.bf16.mxu0 0
        %332 = vmatmul.mubr.bf16.gmra.mxu0 %v261
        %v333 = vpop.f32.mrf.mxu0
        %v334 = vadd.f32 %v242, %v333
        %v335 = vpop.f32.mrf.mxu0
        %v336 = vpop.f32.mrf.mxu0
        %v337 = vadd.f32 %v242, %v336
        %v338 = vpop.f32.mrf.mxu0
        %339 = vmatprep.mubr.bf16.mxu0 0
        %340 = vmatmul.mubr.bf16.gmra.mxu0 %v264
        %v341 = vpop.f32.mrf.mxu0
        %v342 = vadd.f32 %v242, %v341
        %v343 = vpop.f32.mrf.mxu0
        %v344 = vpop.f32.mrf.mxu0
        %v345 = vadd.f32 %v242, %v344
        %v346 = vpop.f32.mrf.mxu0
        %347 = vmatprep.mubr.bf16.mxu0 0
        %348 = vmatmul.mubr.bf16.gmra.mxu0 %v267
        %v349 = vpop.f32.mrf.mxu0
        %v350 = vadd.f32 %v242, %v349
        %v351 = vpop.f32.mrf.mxu0
        %v352 = vpop.f32.mrf.mxu0
        %v353 = vadd.f32 %v242, %v352
        %v354 = vpop.f32.mrf.mxu0
        %355 = vmatprep.mubr.bf16.mxu0 0
        %356 = vmatmul.mubr.bf16.gmra.mxu0 %v270
        %v357 = vpop.f32.mrf.mxu0
        %v358 = vadd.f32 %v242, %v357
        %v359 = vpop.f32.mrf.mxu0
        %v360 = vpop.f32.mrf.mxu0
        %v361 = vadd.f32 %v242, %v360
        %v362 = vpop.f32.mrf.mxu0
        %363 = vmatprep.mubr.bf16.mxu0 0
        %364 = vmatmul.mubr.bf16.gmra.mxu0 %v273
        %v365 = vpop.f32.mrf.mxu0
        %v366 = vadd.f32 %v242, %v365
        %v367 = vpop.f32.mrf.mxu0
        %v368 = vpop.f32.mrf.mxu0
        %v369 = vadd.f32 %v242, %v368
        %v370 = vpop.f32.mrf.mxu0
        %371 = vdwg.mxu0
        %v372 = vmax.f32 %v310, 0.0
        %v373 = vmax.f32 %v313, 0.0
        %v374 = vmax.f32 %v318, 0.0
        %v375 = vmax.f32 %v321, 0.0
        %v376 = vmax.f32 %v326, 0.0
        %v377 = vmax.f32 %v329, 0.0
        %v378 = vmax.f32 %v334, 0.0
        %v379 = vmax.f32 %v337, 0.0
        %v380 = vmax.f32 %v342, 0.0
        %v381 = vmax.f32 %v345, 0.0
        %v382 = vmax.f32 %v350, 0.0
        %v383 = vmax.f32 %v353, 0.0
        %v384 = vmax.f32 %v358, 0.0
        %v385 = vmax.f32 %v361, 0.0
        %v386 = vmax.f32 %v366, 0.0
        %v387 = vmax.f32 %v369, 0.0
        %388 = vst [vmem:[%s195] sm:$0xff] %v372
        %389 = vst [vmem:[%s195 + $0x8] sm:$0xff] %v373
        %390 = vst [vmem:[%s195 + $0x10] sm:$0xff] %v374
        %391 = vst [vmem:[%s195 + $0x18] sm:$0xff] %v375
        %392 = vst [vmem:[%s195 + $0x20] sm:$0xff] %v376
        %393 = vst [vmem:[%s195 + $0x28] sm:$0xff] %v377
        %394 = vst [vmem:[%s195 + $0x30] sm:$0xff] %v378
        %395 = vst [vmem:[%s195 + $0x38] sm:$0xff] %v379
        %396 = vst [vmem:[%s195 + $0x40] sm:$0xff] %v380
        %397 = vst [vmem:[%s195 + $0x48] sm:$0xff] %v381
        %398 = vst [vmem:[%s195 + $0x50] sm:$0xff] %v382
        %399 = vst [vmem:[%s195 + $0x58] sm:$0xff] %v383
        %400 = vst [vmem:[%s195 + $0x60] sm:$0xff] %v384
        %401 = vst [vmem:[%s195 + $0x68] sm:$0xff] %v385
        %402 = vst [vmem:[%s195 + $0x70] sm:$0xff] %v386
        %403 = vst [vmem:[%s195 + $0x78] sm:$0xff] %v387
        %s404 = smul.u32 %s22, 128
        %v405 = vlaneseq
        %v406 = vshrl.u32 %v405, 7
        %v407 = vadd.s32 %v406, 8
        %v408 = vadd.s32 %v406, 16
        %v409 = vadd.s32 %v406, 24
        %v410 = vadd.s32 %v406, 32
        %v411 = vadd.s32 %v406, 40
        %v412 = vadd.s32 %v406, 48
        %v413 = vadd.s32 %v406, 56
        %v414 = vadd.s32 %v406, 64
        %v415 = vadd.s32 %v406, 72
        %v416 = vadd.s32 %v406, 80
        %v417 = vadd.s32 %v406, 88
        %v418 = vadd.s32 %v406, 96
        %v419 = vadd.s32 %v406, 104
        %v420 = vadd.s32 %v406, 112
        %v421 = vadd.s32 %v406, 120
        %v422 = vstv %s404
        %v423 = vadd.s32 %v422, %v406
        %v424 = vadd.s32 %v422, %v407
        %v425 = vadd.s32 %v422, %v408
        %v426 = vadd.s32 %v422, %v409
        %v427 = vadd.s32 %v422, %v410
        %v428 = vadd.s32 %v422, %v411
        %v429 = vadd.s32 %v422, %v412
        %v430 = vadd.s32 %v422, %v413
        %v431 = vadd.s32 %v422, %v414
        %v432 = vadd.s32 %v422, %v415
        %v433 = vadd.s32 %v422, %v416
        %v434 = vadd.s32 %v422, %v417
        %v435 = vadd.s32 %v422, %v418
        %v436 = vadd.s32 %v422, %v419
        %v437 = vadd.s32 %v422, %v420
        %v438 = vadd.s32 %v422, %v421
        %vm439 = vcmp.lt.s32.totalorder %v423, 200
        %vm440 = vcmp.lt.s32.totalorder %v424, 200
        %vm441 = vcmp.lt.s32.totalorder %v425, 200
        %vm442 = vcmp.lt.s32.totalorder %v426, 200
        %vm443 = vcmp.lt.s32.totalorder %v427, 200
        %vm444 = vcmp.lt.s32.totalorder %v428, 200
        %vm445 = vcmp.lt.s32.totalorder %v429, 200
        %vm446 = vcmp.lt.s32.totalorder %v430, 200
        %vm447 = vcmp.lt.s32.totalorder %v431, 200
        %vm448 = vcmp.lt.s32.totalorder %v432, 200
        %vm449 = vcmp.lt.s32.totalorder %v433, 200
        %vm450 = vcmp.lt.s32.totalorder %v434, 200
        %vm451 = vcmp.lt.s32.totalorder %v435, 200
        %vm452 = vcmp.lt.s32.totalorder %v436, 200
        %vm453 = vcmp.lt.s32.totalorder %v437, 200
        %vm454 = vcmp.lt.s32.totalorder %v438, 200
        %v455 = vsel %vm439, 1, 0
        %v456 = vsel %vm440, 1, 0
        %v457 = vsel %vm441, 1, 0
        %v458 = vsel %vm442, 1, 0
        %v459 = vsel %vm443, 1, 0
        %v460 = vsel %vm444, 1, 0
        %v461 = vsel %vm445, 1, 0
        %v462 = vsel %vm446, 1, 0
        %v463 = vsel %vm447, 1, 0
        %v464 = vsel %vm448, 1, 0
        %v465 = vsel %vm449, 1, 0
        %v466 = vsel %vm450, 1, 0
        %v467 = vsel %vm451, 1, 0
        %v468 = vsel %vm452, 1, 0
        %v469 = vsel %vm453, 1, 0
        %v470 = vsel %vm454, 1, 0
        %vm471 = vcmp.eq.s32.totalorder %v455, 1
        %vm472 = vcmp.eq.s32.totalorder %v456, 1
        %vm473 = vcmp.eq.s32.totalorder %v457, 1
        %vm474 = vcmp.eq.s32.totalorder %v458, 1
        %vm475 = vcmp.eq.s32.totalorder %v459, 1
        %vm476 = vcmp.eq.s32.totalorder %v460, 1
        %vm477 = vcmp.eq.s32.totalorder %v461, 1
        %vm478 = vcmp.eq.s32.totalorder %v462, 1
        %vm479 = vcmp.eq.s32.totalorder %v463, 1
        %vm480 = vcmp.eq.s32.totalorder %v464, 1
        %vm481 = vcmp.eq.s32.totalorder %v465, 1
        %vm482 = vcmp.eq.s32.totalorder %v466, 1
        %vm483 = vcmp.eq.s32.totalorder %v467, 1
        %vm484 = vcmp.eq.s32.totalorder %v468, 1
        %vm485 = vcmp.eq.s32.totalorder %v469, 1
        %vm486 = vcmp.eq.s32.totalorder %v470, 1
        %v487 = vsel %vm471, %v372, 0.0
        %v488 = vsel %vm472, %v373, 0.0
        %v489 = vsel %vm473, %v374, 0.0
        %v490 = vsel %vm474, %v375, 0.0
        %v491 = vsel %vm475, %v376, 0.0
        %v492 = vsel %vm476, %v377, 0.0
        %v493 = vsel %vm477, %v378, 0.0
        %v494 = vsel %vm478, %v379, 0.0
        %v495 = vsel %vm479, %v380, 0.0
        %v496 = vsel %vm480, %v381, 0.0
        %v497 = vsel %vm481, %v382, 0.0
        %v498 = vsel %vm482, %v383, 0.0
        %v499 = vsel %vm483, %v384, 0.0
        %v500 = vsel %vm484, %v385, 0.0
        %v501 = vsel %vm485, %v386, 0.0
        %v502 = vsel %vm486, %v387, 0.0
        %v503 = vadd.f32 %v487, %v488
        %v504 = vadd.f32 %v503, %v489
        %v505 = vadd.f32 %v504, %v490
        %v506 = vadd.f32 %v505, %v491
        %v507 = vadd.f32 %v506, %v492
        %v508 = vadd.f32 %v507, %v493
        %v509 = vadd.f32 %v508, %v494
        %v510 = vadd.f32 %v509, %v495
        %v511 = vadd.f32 %v510, %v496
        %v512 = vadd.f32 %v511, %v497
        %v513 = vadd.f32 %v512, %v498
        %v514 = vadd.f32 %v513, %v499
        %v515 = vadd.f32 %v514, %v500
        %v516 = vadd.f32 %v515, %v501
        %v517 = vadd.f32 %v516, %v502
        %v518 = vrot.slane %v517, 4
        %v519 = vadd.f32 %v517, %v518
        %v520 = vrot.slane %v519, 2
        %v521 = vadd.f32 %v519, %v520
        %v522 = vrot.slane %v521, 1
        %v523 = vadd.f32 %v521, %v522
        %v524 = vmul.f32 %v487, %v487
        %v525 = vmul.f32 %v488, %v488
        %v526 = vmul.f32 %v489, %v489
        %v527 = vmul.f32 %v490, %v490
        %v528 = vmul.f32 %v491, %v491
        %v529 = vmul.f32 %v492, %v492
        %v530 = vmul.f32 %v493, %v493
        %v531 = vmul.f32 %v494, %v494
        %v532 = vmul.f32 %v495, %v495
        %v533 = vmul.f32 %v496, %v496
        %v534 = vmul.f32 %v497, %v497
        %v535 = vmul.f32 %v498, %v498
        %v536 = vmul.f32 %v499, %v499
        %v537 = vmul.f32 %v500, %v500
        %v538 = vmul.f32 %v501, %v501
        %v539 = vmul.f32 %v502, %v502
        %v540 = vadd.f32 %v524, %v525
        %v541 = vadd.f32 %v540, %v526
        %v542 = vadd.f32 %v541, %v527
        %v543 = vadd.f32 %v542, %v528
        %v544 = vadd.f32 %v543, %v529
        %v545 = vadd.f32 %v544, %v530
        %v546 = vadd.f32 %v545, %v531
        %v547 = vadd.f32 %v546, %v532
        %v548 = vadd.f32 %v547, %v533
        %v549 = vadd.f32 %v548, %v534
        %v550 = vadd.f32 %v549, %v535
        %v551 = vadd.f32 %v550, %v536
        %v552 = vadd.f32 %v551, %v537
        %v553 = vadd.f32 %v552, %v538
        %v554 = vadd.f32 %v553, %v539
        %v555 = vrot.slane %v554, 4
        %v556 = vadd.f32 %v554, %v555
        %v557 = vrot.slane %v556, 2
        %v558 = vadd.f32 %v556, %v557
        %v559 = vrot.slane %v558, 1
        %v560 = vadd.f32 %v558, %v559
        %vm561 = vcmask 1040384
        %v562 = vsel %vm561, %v523, %v560
        %vm563 = vcmask 1041408
        %v564 = vsel %vm563, %v562, 0.0
        %565 = vst [vmem:[%s202] sm:$0xff] %v564
        %s566 = sand.u32 %s98, 1
        %s567 = scalar_lea.sflag [#allocation3], %s566
        %s568 = sand.u32 %s98, 1
        %s569 = smul.addr %s568, 128
        %s570 = scalar_lea.vmem [#allocation2], %s569
        %s571 = sand.u32 %s124, 1
        %s572 = scalar_lea.sflag [#allocation5], %s571
        %s573 = sand.u32 %s124, 1
        %s574 = smul.addr %s573, 8
        %s575 = scalar_lea.vmem [#allocation4], %s574
        // Predicated region
        $region33: #{tpu_custom_call.1} parent=31 // pred_check
          %p576 = pneg %p108
        $region34: #{tpu_custom_call.1} parent=31 // pred_check_branch
          %578 = sbr.rel (%p576) target = $region36
        $region35: #{tpu_custom_call.1} parent=31 // pred_region
          %s579 = smul.u32 16, %s22
          %s581 = ssub.s32 2048, 2048
          %582 = vsyncadd %s567, %s581
          %s583 = smul.addr %s579, 128
          %s584 = scalar_lea.hbm %s3, %s583
          %s585 = sshll.u32 %s570, 4
          %s586 = int_to_ptr.vmem [resolvable:$true] %s585
          %591 = dma.vmem_to_hbm [thread:$0]  %s586, 2048, %s584, %s567, 128, 128, 8
        $region36: #{tpu_custom_call.1} parent=31 // pred_fallthru
          _
        // Predicated region
        $region37: #{tpu_custom_call.1} parent=31 // pred_check
          %p592 = pneg %p134
        $region38: #{tpu_custom_call.1} parent=31 // pred_check_branch
          %594 = sbr.rel (%p592) target = $region40
        $region39: #{tpu_custom_call.1} parent=31 // pred_region
          %s596 = ssub.s32 128, 128
          %597 = vsyncadd %s572, %s596
          %s598 = smul.addr %s22, 128
          %s599 = scalar_lea.hbm %s4, %s598
          %s601 = sshll.u32 %s575, 4
          %s602 = int_to_ptr.vmem [resolvable:$true] %s601
          %604 = dma.vmem_to_hbm [thread:$0]  %s602, 128, %s599, %s572
        $region40: #{tpu_custom_call.1} parent=31 // pred_fallthru
          _
      $region32: #{tpu_custom_call.1} parent=5 // pred_fallthru
        _
      %p605 = scmp.le.s32.totalorder 2, %s17
      // Predicated region
      $region41: #{tpu_custom_call.1} parent=5 // pred_check
        %p606 = pneg %p605
      $region42: #{tpu_custom_call.1} parent=5 // pred_check_branch
        %608 = sbr.rel (%p606) target = $region44
      $region43: #{tpu_custom_call.1} parent=5 // pred_region
        %s609 = ssub.s32 %s17, 2
        // Predicated region
        $region45: #{tpu_custom_call.1} parent=43 // pred_check
          %p610 = pneg %p114
        $region46: #{tpu_custom_call.1} parent=43 // pred_check_branch
          %612 = sbr.rel (%p610) target = $region48
        $region47: #{tpu_custom_call.1} parent=43 // pred_region
          %s613 = sand.u32 %s99, 1
          %s614 = scalar_lea.sflag [#allocation3], %s613
          %s615 = sand.u32 %s99, 1
          %s616 = smul.addr %s615, 128
          %s617 = scalar_lea.vmem [#allocation2], %s616
          %618 = dma.done %s614, 2048
        $region48: #{tpu_custom_call.1} parent=43 // pred_fallthru
          _
        // Predicated region
        $region49: #{tpu_custom_call.1} parent=43 // pred_check
          %p619 = pneg %p140
        $region50: #{tpu_custom_call.1} parent=43 // pred_check_branch
          %621 = sbr.rel (%p619) target = $region52
        $region51: #{tpu_custom_call.1} parent=43 // pred_region
          %s622 = sand.u32 %s125, 1
          %s623 = scalar_lea.sflag [#allocation5], %s622
          %s624 = sand.u32 %s125, 1
          %s625 = smul.addr %s624, 8
          %s626 = scalar_lea.vmem [#allocation4], %s625
          %627 = dma.done %s623, 128
        $region52: #{tpu_custom_call.1} parent=43 // pred_fallthru
          _
      $region44: #{tpu_custom_call.1} parent=5 // pred_fallthru
        _
    $region6: #{tpu_custom_call.1} parent=1 // loop_footer
      %s21 = sadd.s32 1, %s17
    $region7: #{tpu_custom_call.1} parent=1 // loop_footer_branch
      %16 = sbr.rel target = $region3
    $region8: #{tpu_custom_call.1} parent=1 // loop_exit
      _
    %628 = vsyncpa [#allocation3], 1
    %s629 = scalar_lea.sflag [#allocation3], 1
    %630 = vsyncpa %s629, 1
    %631 = vsyncpa [#allocation5], 1
    %s632 = scalar_lea.sflag [#allocation5], 1
    %633 = vsyncpa %s632, 1

</llo_original>
